<compile_context>
chip_gen: v7x
topology: tpu7x:2x2x1
jax: 0.10.0
libtpu: 0.0.40
codegen_flags: <defaults>
</compile_context>

<pallas_src>
import functools

import jax
import jax.numpy as jnp
from jax.experimental import pallas as pl
from jax.experimental.pallas import tpu as pltpu


# --------------------------------------------------------------------------- #
# Unfused path: 1x1 conv on lane-dense (C_in, spatial) tiles.
# --------------------------------------------------------------------------- #
def _conv1x1_kernel(x_ref, w_ref, b_ref, o_ref):
    # x_ref: (C_in, ts)  lane-dense spatial tile
    # w_ref: (C_out, C_in) resident weight
    # b_ref: (C_out, 1)    resident bias
    # o_ref: (C_out, ts)   lane-dense output tile
    c_in = x_ref.shape[0]
    x = x_ref[...]
    w = w_ref[...]
    b = b_ref[...].astype(jnp.float32)
    if c_in <= 4:
        # VPU broadcast FMA chain: at K<=4 the MXU would be <1% utilized and adds
        # push/pop latency.  Bias is folded into the accumulator init so there is
        # no separate full-tile bias pass at the end.
        xf = x.astype(jnp.float32)
        wf = w.astype(jnp.float32)
        acc = wf[:, 0:1] * xf[0:1, :] + b
        for k in range(1, c_in):
            acc = acc + wf[:, k:k + 1] * xf[k:k + 1, :]
    else:
        acc = jnp.dot(w, x, preferred_element_type=jnp.float32) + b
    o_ref[...] = acc.astype(o_ref.dtype)


def conv1x1_pallas(x3, w2d, bias, *, ts_max=8192):
    """1x1 conv as a channels-first matmul.

    x3:   (B, C_in, HW)  -- NCHW with spatial flattened (free reshape)
    w2d:  (C_out, C_in)
    bias: (C_out,)
    returns (B, C_out, HW)
    """
    B, C_in, HW = x3.shape
    C_out = w2d.shape[0]
    dtype = x3.dtype

    # Lane-dense spatial tile: multiple of 128, as large as useful.  No padding:
    # the last block may overhang HW; Pallas masks the out-of-range output lanes
    # on store, so no extra HBM copies for pad/slice.
    ts = min(ts_max, pl.cdiv(HW, 128) * 128)
    if B == 1 and HW > 128:
        # Keep >= 2 parallel grid steps so both v7x TensorCores get work.
        ts = min(ts, pl.cdiv(pl.cdiv(HW, 2), 128) * 128)
    n_s = pl.cdiv(HW, ts)

    bias2d = bias.reshape(C_out, 1)
    itemsize = jnp.dtype(dtype).itemsize

    return pl.pallas_call(
        _conv1x1_kernel,
        out_shape=jax.ShapeDtypeStruct((B, C_out, HW), dtype),
        grid_spec=pltpu.PrefetchScalarGridSpec(
            num_scalar_prefetch=0,
            grid=(B, n_s),
            in_specs=[
                pl.BlockSpec((None, C_in, ts), lambda b, s: (b, 0, s)),
                pl.BlockSpec((C_out, C_in), lambda b, s: (0, 0)),   # resident weight
                pl.BlockSpec((C_out, 1), lambda b, s: (0, 0)),      # resident bias
            ],
            out_specs=pl.BlockSpec((None, C_out, ts), lambda b, s: (b, 0, s)),
        ),
        compiler_params=pltpu.CompilerParams(
            dimension_semantics=("parallel", "parallel"),
        ),
        cost_estimate=pl.CostEstimate(
            flops=2 * B * HW * C_in * C_out,
            transcendentals=0,
            bytes_accessed=itemsize * (B * C_in * HW + C_in * C_out + C_out
                                       + B * C_out * HW),
        ),
    )(x3, w2d, bias2d)


# --------------------------------------------------------------------------- #
# Fused path: conv + pixel shuffle in one kernel (single HBM write of the
# r^2-larger output).
# --------------------------------------------------------------------------- #
def _conv1x1_shuffle_kernel(x_ref, w_ref, b_ref, o_ref, *, ratio):
    # x_ref: (C_in, th, W); w_ref: (C_out, C_in); b_ref: (C_out, 1)
    # o_ref: (C, th*ratio, W*ratio) -- final pixel-shuffled layout.
    c_in, th, w_dim = x_ref.shape
    c_out = w_ref.shape[0]
    r = ratio
    c_grp = c_out // (r * r)

    x = x_ref[...].astype(jnp.float32)
    w = w_ref[...].astype(jnp.float32)
    b = b_ref[...].astype(jnp.float32)[:, :, None]      # (C_out, 1, 1)

    if c_in <= 8:
        # VPU broadcast FMA chain, bias folded into the init.
        acc = w[:, 0:1, None] * x[0:1] + b
        for k in range(1, c_in):
            acc = acc + w[:, k:k + 1, None] * x[k:k + 1]
    else:
        acc = jnp.einsum("ok,kij->oij", w, x,
                         preferred_element_type=jnp.float32) + b

    # Pixel-shuffle epilogue in VMEM: (C*r*r, th, W) -> (C, th*r, W*r).
    # out[c, i*r+ri, j*r+rj] = acc[c*r*r + ri*r + rj, i, j]  (matches torch
    # view/permute(0,1,4,2,5,3)/view).  The relayout rides the otherwise idle
    # XLU / load-store slots of this DMA-bound kernel.
    y = acc.reshape(c_grp, r, r, th, w_dim)
    y = jnp.transpose(y, (0, 3, 1, 4, 2))                # (C, th, r, W, r)
    o_ref[...] = y.reshape(c_grp, th * r, w_dim * r).astype(o_ref.dtype)


def upsample_fused_pallas(x, w2d, bias, ratio, *, max_x_block_elems=131072):
    """Fused 1x1 conv + pixel shuffle.

    x:    (B, C_in, H, W)
    w2d:  (C_out, C_in) with C_out = C_in * ratio^2
    bias: (C_out,)
    returns (B, C_in, H*ratio, W*ratio) already pixel-shuffled.
    """
    B, C_in, H, W = x.shape
    C_out = w2d.shape[0]
    r = ratio
    C = C_out // (r * r)
    dtype = x.dtype

    # Row tile: full H if it fits, else a multiple of 8 sized so the f32 conv
    # accumulator plus the r^2-larger output block stay a few MiB (safe under
    # the v7x 32 MiB scoped VMEM default).
    th_cap = max(8, (max_x_block_elems // max(C_in * W, 1)) // 8 * 8)
    th = H if H <= th_cap else th_cap
    if B == 1 and th == H and H >= 16:
        # Keep >= 2 parallel grid steps for v7x's 2 TensorCores.
        half = ((H // 2 + 7) // 8) * 8
        if half < H:
            th = half
    n_h = pl.cdiv(H, th)

    bias2d = bias.reshape(C_out, 1)
    itemsize = jnp.dtype(dtype).itemsize

    return pl.pallas_call(
        functools.partial(_conv1x1_shuffle_kernel, ratio=r),
        out_shape=jax.ShapeDtypeStruct((B, C, H * r, W * r), dtype),
        grid_spec=pltpu.PrefetchScalarGridSpec(
            num_scalar_prefetch=0,
            grid=(B, n_h),
            in_specs=[
                pl.BlockSpec((None, C_in, th, W), lambda b, h: (b, 0, h, 0)),
                pl.BlockSpec((C_out, C_in), lambda b, h: (0, 0)),
                pl.BlockSpec((C_out, 1), lambda b, h: (0, 0)),
            ],
            out_specs=pl.BlockSpec((None, C, th * r, W * r),
                                   lambda b, h: (b, 0, h, 0)),
        ),
        compiler_params=pltpu.CompilerParams(
            dimension_semantics=("parallel", "parallel"),
        ),
        cost_estimate=pl.CostEstimate(
            flops=2 * B * H * W * C_in * C_out,
            transcendentals=0,
            bytes_accessed=itemsize * (B * C_in * H * W + C_in * C_out + C_out
                                       + B * C * H * r * W * r),
        ),
    )(x, w2d, bias2d)


# --------------------------------------------------------------------------- #
# Module-level forward.
# --------------------------------------------------------------------------- #
def upsample_forward(x, weight, bias, ratio):
    """Equivalent of Upsample.forward.

    x:      (B, C, H, W)   NCHW, like PyTorch
    weight: (C_out, C_in, 1, 1) with C_out = C * ratio * ratio
    bias:   (C_out,)
    returns (B, C, H*ratio, W*ratio)
    """
    B, C, H, W = x.shape
    C_out = weight.shape[0]
    assert C_out == C * ratio * ratio
    w2d = weight.reshape(C_out, C)

    # Preferred: fused conv + pixel shuffle (one HBM write of the big tensor),
    # used when the final rows are lane-dense.  Guarded so any Mosaic lowering /
    # runtime issue with the in-kernel shuffle relayout falls back cleanly.
    if W * ratio >= 128:
        try:
            out = upsample_fused_pallas(x, w2d, bias, ratio)
            return jax.block_until_ready(out)
        except Exception:  # noqa: BLE001 - fall back to the unfused path
            pass

    # Fallback: Pallas 1x1 conv on lane-dense (B, C, H*W) tiles, then the
    # pixel-shuffle transpose in XLA (only remaining layout pass on this path).
    x3 = x.reshape(B, C, H * W)                        # free reshape (NCHW contiguous)
    y3 = conv1x1_pallas(x3, w2d, bias)                 # (B, C_out, H*W)
    y = y3.reshape(B, C, ratio, ratio, H, W)
    y = jnp.transpose(y, (0, 1, 4, 2, 5, 3))
    return y.reshape(B, C, H * ratio, W * ratio)


def _reference(x, weight, bias, ratio):
    B, C, H, W = x.shape
    C_out = weight.shape[0]
    y = jnp.einsum("bchw,oc->bohw", x, weight.reshape(C_out, C)) \
        + bias[None, :, None, None]
    y = y.reshape(B, C, ratio, ratio, H, W)
    y = jnp.transpose(y, (0, 1, 4, 2, 5, 3))
    return y.reshape(B, C, H * ratio, W * ratio)


if __name__ == "__main__":
    ratio = 2
    key = jax.random.PRNGKey(0)
    kx, kw, kb, kx2, kx3 = jax.random.split(key, 5)

    B, C = 2, 4
    C_out = C * ratio * ratio
    weight = jax.random.normal(kw, (C_out, C, 1, 1), dtype=jnp.float32) * 0.1
    bias = jax.random.normal(kb, (C_out,), dtype=jnp.float32) * 0.1

    # 1) Small spec-consistent shape (W*ratio = 32 < 128 -> unfused conv path).
    x = jax.random.normal(kx, (B, C, 16, 16), dtype=jnp.float32)
    out = jax.block_until_ready(upsample_forward(x, weight, bias, ratio))
    ref = _reference(x, weight, bias, ratio)
    assert out.shape == (B, C, 32, 32)
    assert jnp.allclose(out, ref, atol=1e-5, rtol=1e-5)

    # 2) Ragged spatial size (HW = 100): exercises the pad-free overhanging block.
    x2 = jax.random.normal(kx2, (B, C, 10, 10), dtype=jnp.float32)
    out2 = jax.block_until_ready(upsample_forward(x2, weight, bias, ratio))
    ref2 = _reference(x2, weight, bias, ratio)
    assert out2.shape == (B, C, 20, 20)
    assert jnp.allclose(out2, ref2, atol=1e-5, rtol=1e-5)

    # 3) Lane-dense output rows (W*ratio = 128): exercises the fused conv+shuffle
    #    kernel (falls back automatically if its relayout does not lower).
    x3 = jax.random.normal(kx3, (B, C, 8, 64), dtype=jnp.float32)
    out3 = jax.block_until_ready(upsample_forward(x3, weight, bias, ratio))
    ref3 = _reference(x3, weight, bias, ratio)
    assert out3.shape == (B, C, 16, 128)
    assert jnp.allclose(out3, ref3, atol=1e-5, rtol=1e-5)

    print("KERNEL_OK")
</pallas_src>

<mosaic_0001>
module attributes {stable_mosaic.version = 11 : i64} {
  func.func @_conv1x1_kernel(%arg0: i32, %arg1: i32, %arg2: memref<1x4x256xf32, #tpu.memory_space<vmem>>, %arg3: memref<16x4xf32, #tpu.memory_space<vmem>>, %arg4: memref<16x1xf32, #tpu.memory_space<vmem>>, %arg5: memref<1x16x256xf32, #tpu.memory_space<vmem>>) attributes {dimension_semantics = [#tpu.dimension_semantics<parallel>, #tpu.dimension_semantics<parallel>], iteration_bounds = array<i64: 2, 1>, scalar_prefetch = 0 : i64, scratch_operands = 0 : i64, tpu.core_type = #tpu.core_type<tc>, window_params = [{transform_indices = @transform_0, window_bounds = array<i64: 1, 4, 256>}, {pipeline_mode = #tpu.pipeline_mode<synchronous>, transform_indices = @transform_1, window_bounds = array<i64: 16, 4>}, {pipeline_mode = #tpu.pipeline_mode<synchronous>, transform_indices = @transform_2, window_bounds = array<i64: 16, 1>}, {transform_indices = @transform_3, window_bounds = array<i64: 1, 16, 256>}]} {
    %c0 = arith.constant 0 : index
    %c0_0 = arith.constant 0 : index
    %c0_1 = arith.constant 0 : index
    %0 = vector.load %arg2[%c0, %c0_0, %c0_1] : memref<1x4x256xf32, #tpu.memory_space<vmem>>, vector<1x4x256xf32>
    %1 = vector.shape_cast %0 : vector<1x4x256xf32> to vector<4x256xf32>
    %c0_2 = arith.constant 0 : index
    %c0_3 = arith.constant 0 : index
    %2 = vector.load %arg3[%c0_2, %c0_3] : memref<16x4xf32, #tpu.memory_space<vmem>>, vector<16x4xf32>
    %c0_4 = arith.constant 0 : index
    %c0_5 = arith.constant 0 : index
    %3 = vector.load %arg4[%c0_4, %c0_5] : memref<16x1xf32, #tpu.memory_space<vmem>>, vector<16x1xf32>
    %4 = vector.extract_strided_slice %2 {offsets = [0, 0], sizes = [16, 1], strides = [1, 1]} : vector<16x4xf32> to vector<16x1xf32>
    %5 = vector.extract_strided_slice %1 {offsets = [0, 0], sizes = [1, 256], strides = [1, 1]} : vector<4x256xf32> to vector<1x256xf32>
    %6 = vector.broadcast %4 : vector<16x1xf32> to vector<16x256xf32>
    %7 = vector.broadcast %5 : vector<1x256xf32> to vector<16x256xf32>
    %8 = arith.mulf %6, %7 : vector<16x256xf32>
    %9 = vector.broadcast %3 : vector<16x1xf32> to vector<16x256xf32>
    %10 = arith.addf %8, %9 : vector<16x256xf32>
    %11 = vector.extract_strided_slice %2 {offsets = [0, 1], sizes = [16, 1], strides = [1, 1]} : vector<16x4xf32> to vector<16x1xf32>
    %12 = vector.extract_strided_slice %1 {offsets = [1, 0], sizes = [1, 256], strides = [1, 1]} : vector<4x256xf32> to vector<1x256xf32>
    %13 = vector.broadcast %11 : vector<16x1xf32> to vector<16x256xf32>
    %14 = vector.broadcast %12 : vector<1x256xf32> to vector<16x256xf32>
    %15 = arith.mulf %13, %14 : vector<16x256xf32>
    %16 = arith.addf %10, %15 : vector<16x256xf32>
    %17 = vector.extract_strided_slice %2 {offsets = [0, 2], sizes = [16, 1], strides = [1, 1]} : vector<16x4xf32> to vector<16x1xf32>
    %18 = vector.extract_strided_slice %1 {offsets = [2, 0], sizes = [1, 256], strides = [1, 1]} : vector<4x256xf32> to vector<1x256xf32>
    %19 = vector.broadcast %17 : vector<16x1xf32> to vector<16x256xf32>
    %20 = vector.broadcast %18 : vector<1x256xf32> to vector<16x256xf32>
    %21 = arith.mulf %19, %20 : vector<16x256xf32>
    %22 = arith.addf %16, %21 : vector<16x256xf32>
    %23 = vector.extract_strided_slice %2 {offsets = [0, 3], sizes = [16, 1], strides = [1, 1]} : vector<16x4xf32> to vector<16x1xf32>
    %24 = vector.extract_strided_slice %1 {offsets = [3, 0], sizes = [1, 256], strides = [1, 1]} : vector<4x256xf32> to vector<1x256xf32>
    %25 = vector.broadcast %23 : vector<16x1xf32> to vector<16x256xf32>
    %26 = vector.broadcast %24 : vector<1x256xf32> to vector<16x256xf32>
    %27 = arith.mulf %25, %26 : vector<16x256xf32>
    %28 = arith.addf %22, %27 : vector<16x256xf32>
    %c0_6 = arith.constant 0 : index
    %c0_7 = arith.constant 0 : index
    %c0_8 = arith.constant 0 : index
    %29 = vector.load %arg5[%c0_6, %c0_7, %c0_8] : memref<1x16x256xf32, #tpu.memory_space<vmem>>, vector<1x16x256xf32>
    %30 = vector.shape_cast %29 : vector<1x16x256xf32> to vector<16x256xf32>
    %31 = vector.shape_cast %28 : vector<16x256xf32> to vector<1x16x256xf32>
    tpu.vector_store %arg5[%c0_6, %c0_7, %c0_8], %31 {strides = array<i32>} : memref<1x16x256xf32, #tpu.memory_space<vmem>>, vector<1x16x256xf32>,
    return
  }
  func.func @transform_0(%arg0: i32, %arg1: i32) -> (i32, i32, i32) {
    %c0_i32 = arith.constant 0 : i32
    %c0_i32_0 = arith.constant 0 : i32
    return %arg0, %c0_i32, %arg1 : i32, i32, i32
  }
  func.func @transform_1(%arg0: i32, %arg1: i32) -> (i32, i32) {
    %c0_i32 = arith.constant 0 : i32
    %c0_i32_0 = arith.constant 0 : i32
    %c0_i32_1 = arith.constant 0 : i32
    return %c0_i32, %c0_i32_0 : i32, i32
  }
  func.func @transform_2(%arg0: i32, %arg1: i32) -> (i32, i32) {
    %c0_i32 = arith.constant 0 : i32
    %c0_i32_0 = arith.constant 0 : i32
    %c0_i32_1 = arith.constant 0 : i32
    return %c0_i32, %c0_i32_0 : i32, i32
  }
  func.func @transform_3(%arg0: i32, %arg1: i32) -> (i32, i32, i32) {
    %c0_i32 = arith.constant 0 : i32
    %c0_i32_0 = arith.constant 0 : i32
    return %arg0, %c0_i32, %arg1 : i32, i32, i32
  }
}

</mosaic_0001>

<llo_original>
// kernel: tpu_custom_call.1
$region0: #{tpu_custom_call.1}
  #allocation0 [shape = 'u32[]', space=smem, size = 0x4, offset = 0x4, fixed_abs, tag = 'smem constant byte address 0x4 - core index']
  #allocation1 [shape = 'u32[144,128]{1,0:T(1,128)}', space=vmem, size = 0x12000, scoped, tag = 'internal scratch']
  %s0 = inlined_call_operand.vmem [shape: f32[2,4,256], index: 0, kind: input, shape index: {}]
  %s1 = inlined_call_operand.vmem [shape: f32[16,4], index: 1, kind: input, shape index: {}]
  %s2 = inlined_call_operand.vmem [shape: f32[16,1], index: 2, kind: input, shape index: {}]
  %s3 = inlined_call_operand.hbm [shape: f32[2,16,256], index: 3, kind: output, shape index: {}]
  %s4 = sld [smem:[#allocation0]]
  $region45: #{tpu_custom_call.1} parent=0
    _
  %s6 = ssub.s32 1, %s4
  %s7 = scalar_select 0, %s6, %s4
  $region1: #{tpu_custom_call.1} parent=0
    #allocation2 [shape = 'u8[32768]{0}', space=vmem, size = 0x8000, scoped, tag = 'output window, operand 0']
    #allocation3 [shape = 's32[2]{0}', space=sflag, size = 0x8, scoped, tag = 'scoped memory for tpu_custom_call.1']
    %8 = vsyncpa [#allocation3], 0
    %s9 = scalar_lea.sflag [#allocation3], 1
    %10 = vsyncpa %s9, 0
    loop: start=0, step=1, limit=4
    $region2: #{tpu_custom_call.1} parent=1 // loop_pre_header
      _
    $region3: #{tpu_custom_call.1} parent=1 // loop_header
      %s12 = sphi 0, %s16
      %p13 = scmp.ge.s32.totalorder %s12, 4
      %s19 = sphi 0, %s31
      %s20 = sphi 0, %s27
      %s21 = sphi 0, %s19
      %s22 = sphi 0, %s20
      %s23 = sphi 0, %s21
      %s24 = sphi 0, %s22
      %s36 = sphi 0, %s38
      %s39 = sphi 0, %s36
      %s40 = sphi 0, %s39
      %s56 = sphi 0, %s40
      %s60 = sphi 0, %s60
      %s62 = sphi 0, %s60
      %s63 = sphi 0, %s62
      %s77 = sphi 0, %s63
      %s81 = sphi 0, %s81
      %s83 = sphi 0, %s81
      %s84 = sphi 0, %s83
      %s98 = sphi 0, %s84
      %s106 = sphi 0, %s108
      %s109 = sphi 0, %s106
      %s110 = sphi 0, %s109
      %s126 = sphi 0, %s110
    $region4: #{tpu_custom_call.1} parent=1 // loop_header_branch
      %15 = sbr.rel (%p13) target = $region8
    $region5: #{tpu_custom_call.1} parent=1 // loop_body
      %s17 = ssub.s32 %s12, 1
      %s18 = ssub.s32 %s12, 2
      %s25 = sadd.s32 1, %s20
      %p26 = scmp.ge.s32.totalorder %s25, 1
      %s27 = scalar_select %p26, 0, %s25
      %s28 = sadd.s32 1, %s19
      %s29 = scalar_select %p26, %s28, %s19
      %p30 = scmp.ge.s32.totalorder %s29, 2
      %s31 = scalar_select %p30, 0, %s29
      %s32 = ssub.s32 %s19, %s31
      %s33 = ssub.s32 %s20, %s27
      %s34 = sor.u32 %s32, %s33
      %p35 = scmp.eq.s32.totalorder %s34, 0
      %s37 = sadd.s32 %s36, 1
      %s38 = scalar_select %p35, %s36, %s37
      %p41 = pneg %p35
      %p42 = scmp.eq.s32.totalorder %s12, 1
      %p43 = por %p41, %p42
      %p44 = scmp.ne.s32.totalorder %s36, %s39
      %p45 = scmp.eq.s32.totalorder %s12, 0
      %p46 = por %p44, %p45
      %p47 = scmp.ne.s32.totalorder %s36, %s39
      %p48 = scmp.eq.s32.totalorder %s17, 1
      %p49 = por %p47, %p48
      %p50 = scmp.ne.s32.totalorder %s39, %s40
      %p51 = scmp.eq.s32.totalorder %s17, 0
      %p52 = por %p50, %p51
      %p53 = scmp.ne.s32.totalorder %s39, %s40
      %p54 = scmp.eq.s32.totalorder %s18, 1
      %p55 = por %p53, %p54
      %p57 = scmp.ne.s32.totalorder %s40, %s56
      %p58 = scmp.eq.s32.totalorder %s18, 0
      %p59 = por %p57, %p58
      %s61 = sadd.s32 %s60, 1
      %p64 = scmp.eq.s32.totalorder %s12, 1
      %p65 = scmp.ne.s32.totalorder %s60, %s62
      %p66 = scmp.eq.s32.totalorder %s12, 0
      %p67 = por %p65, %p66
      %p68 = scmp.ne.s32.totalorder %s60, %s62
      %p69 = scmp.eq.s32.totalorder %s17, 1
      %p70 = por %p68, %p69
      %p71 = scmp.ne.s32.totalorder %s62, %s63
      %p72 = scmp.eq.s32.totalorder %s17, 0
      %p73 = por %p71, %p72
      %p74 = scmp.ne.s32.totalorder %s62, %s63
      %p75 = scmp.eq.s32.totalorder %s18, 1
      %p76 = por %p74, %p75
      %p78 = scmp.ne.s32.totalorder %s63, %s77
      %p79 = scmp.eq.s32.totalorder %s18, 0
      %p80 = por %p78, %p79
      %s82 = sadd.s32 %s81, 1
      %p85 = scmp.eq.s32.totalorder %s12, 1
      %p86 = scmp.ne.s32.totalorder %s81, %s83
      %p87 = scmp.eq.s32.totalorder %s12, 0
      %p88 = por %p86, %p87
      %p89 = scmp.ne.s32.totalorder %s81, %s83
      %p90 = scmp.eq.s32.totalorder %s17, 1
      %p91 = por %p89, %p90
      %p92 = scmp.ne.s32.totalorder %s83, %s84
      %p93 = scmp.eq.s32.totalorder %s17, 0
      %p94 = por %p92, %p93
      %p95 = scmp.ne.s32.totalorder %s83, %s84
      %p96 = scmp.eq.s32.totalorder %s18, 1
      %p97 = por %p95, %p96
      %p99 = scmp.ne.s32.totalorder %s84, %s98
      %p100 = scmp.eq.s32.totalorder %s18, 0
      %p101 = por %p99, %p100
      %s102 = ssub.s32 %s19, %s31
      %s103 = ssub.s32 %s20, %s27
      %s104 = sor.u32 %s102, %s103
      %p105 = scmp.eq.s32.totalorder %s104, 0
      %s107 = sadd.s32 %s106, 1
      %s108 = scalar_select %p105, %s106, %s107
      %p111 = pneg %p105
      %p112 = scmp.eq.s32.totalorder %s12, 1
      %p113 = por %p111, %p112
      %p114 = scmp.ne.s32.totalorder %s106, %s109
      %p115 = scmp.eq.s32.totalorder %s12, 0
      %p116 = por %p114, %p115
      %p117 = scmp.ne.s32.totalorder %s106, %s109
      %p118 = scmp.eq.s32.totalorder %s17, 1
      %p119 = por %p117, %p118
      %p120 = scmp.ne.s32.totalorder %s109, %s110
      %p121 = scmp.eq.s32.totalorder %s17, 0
      %p122 = por %p120, %p121
      %p123 = scmp.ne.s32.totalorder %s109, %s110
      %p124 = scmp.eq.s32.totalorder %s18, 1
      %p125 = por %p123, %p124
      %p127 = scmp.ne.s32.totalorder %s110, %s126
      %p128 = scmp.eq.s32.totalorder %s18, 0
      %p129 = por %p127, %p128
      %p130 = scmp.le.s32.totalorder 1, %s12
      %p131 = scmp.lt.s32.totalorder %s12, 3
      %p132 = pnand %p130, %p131
      %p133 = pneg %p132
      // Predicated region
      $region9: #{tpu_custom_call.1} parent=5 // pred_check
        _
      $region10: #{tpu_custom_call.1} parent=5 // pred_check_branch
        %135 = sbr.rel (%p132) target = $region12
      $region11: #{tpu_custom_call.1} parent=5 // pred_region
        %s136 = ssub.s32 %s12, 1
        // Predicated region
        $region13: #{tpu_custom_call.1} parent=11 // pred_check
          %p137 = pneg %p73
        $region14: #{tpu_custom_call.1} parent=11 // pred_check_branch
          %139 = sbr.rel (%p137) target = $region16
        $region15: #{tpu_custom_call.1} parent=11 // pred_region
          _
        $region16: #{tpu_custom_call.1} parent=11 // pred_fallthru
          _
        // Predicated region
        $region17: #{tpu_custom_call.1} parent=11 // pred_check
          %p140 = pneg %p94
        $region18: #{tpu_custom_call.1} parent=11 // pred_check_branch
          %142 = sbr.rel (%p140) target = $region20
        $region19: #{tpu_custom_call.1} parent=11 // pred_region
          _
        $region20: #{tpu_custom_call.1} parent=11 // pred_fallthru
          _
      $region12: #{tpu_custom_call.1} parent=5 // pred_fallthru
        _
      %p143 = scmp.lt.s32.totalorder %s12, 2
      // Predicated region
      $region21: #{tpu_custom_call.1} parent=5 // pred_check
        %p144 = pneg %p143
      $region22: #{tpu_custom_call.1} parent=5 // pred_check_branch
        %146 = sbr.rel (%p144) target = $region24
      $region23: #{tpu_custom_call.1} parent=5 // pred_region
        // Predicated region
        $region25: #{tpu_custom_call.1} parent=23 // pred_check
          %p147 = pneg %p46
        $region26: #{tpu_custom_call.1} parent=23 // pred_check_branch
          %149 = sbr.rel (%p147) target = $region28
        $region27: #{tpu_custom_call.1} parent=23 // pred_region
          %s150 = smul.u32 2, %s20
          %p151 = scmp.lt.s32.totalorder %s19, 1
          %s152 = scalar_select %p151, %s19, 1
          %p153 = scmp.lt.s32.totalorder %s150, 1
          %s154 = scalar_select %p153, %s150, 1
          %s155 = smul.addr %s152, 2
          %s156 = sadd.s32 %s154, %s155
          %s157 = smul.addr %s156, 4
          %s158 = scalar_lea.vmem %s0, %s157
          %s159 = smul.u32 2, %s20
        $region28: #{tpu_custom_call.1} parent=23 // pred_fallthru
          _
      $region24: #{tpu_custom_call.1} parent=5 // pred_fallthru
        _
      %p160 = scmp.le.s32.totalorder 1, %s12
      %p161 = scmp.lt.s32.totalorder %s12, 3
      %p162 = pnand %p160, %p161
      %p163 = pneg %p162
      // Predicated region
      $region29: #{tpu_custom_call.1} parent=5 // pred_check
        _
      $region30: #{tpu_custom_call.1} parent=5 // pred_check_branch
        %165 = sbr.rel (%p162) target = $region32
      $region31: #{tpu_custom_call.1} parent=5 // pred_region
        %s166 = ssub.s32 %s12, 1
        %s167 = smul.u32 2, %s22
        %p168 = scmp.lt.s32.totalorder %s21, 1
        %s169 = scalar_select %p168, %s21, 1
        %p170 = scmp.lt.s32.totalorder %s167, 1
        %s171 = scalar_select %p170, %s167, 1
        %s172 = smul.addr %s169, 2
        %s173 = sadd.s32 %s171, %s172
        %s174 = smul.addr %s173, 4
        %s175 = scalar_lea.vmem %s0, %s174
        %p176 = pneg %p52
        %p177 = pneg %p49
        %p178 = pneg %p73
        %p179 = pneg %p70
        %p180 = pneg %p94
        %p181 = pneg %p91
        %p182 = pneg %p122
        %p183 = pneg %p119
        %s184 = sand.u32 %s109, 1
        %s185 = scalar_lea.sflag [#allocation3], %s184
        %s186 = sand.u32 %s109, 1
        %s187 = smul.addr %s186, 32
        %s188 = scalar_lea.vmem [#allocation2], %s187
        %s189 = smul.u32 2, %s22
        %p190 = scmp.lt.s32.totalorder %s21, 1
        %s191 = scalar_select %p190, %s21, 1
        %p192 = scmp.lt.s32.totalorder %s189, 1
        %s193 = scalar_select %p192, %s189, 1
        %s194 = smul.addr %s191, 2
        %s195 = sadd.s32 %s193, %s194
        %s196 = smul.addr %s195, 4
        %s197 = scalar_lea.vmem %s0, %s196
        %s198 = smul.u32 2, %s22
        %s199 = smul.u32 2, %s22
        %v200 = vld [vmem:[%s197] sm:$0xff]
        %v201 = vld [vmem:[%s1] sm:$0xff]
        %v202 = vld [vmem:[%s1 + $0x8] sm:$0xff]
        %v203 = vld [vmem:[%s2] sm:$0xff]
        %v204 = vld [vmem:[%s2 + $0x8] sm:$0xff]
        %206 = vset.pattern.permute.xlu0 0
        %207 = vperm.xlu0 %206, %v201
        %v208 = vpop.permute.xlu0 %207
        %211 = vset.pattern.permute.xlu0 0
        %212 = vperm.xlu0 %211, %v202
        %v213 = vpop.permute.xlu0 %212
        %v216 = vlaneseq
        %v217 = vshrl.u32 %v216, 7
        %v218 = vsub.s32 0, %v217
        %v219 = vrot.slane %v200, %v218
        %v220 = vlaneseq
        %v221 = vshrl.u32 %v220, 7
        %v222 = vsub.s32 4, %v221
        %v223 = vrot.slane %v200, %v222
        %v226 = vlaneseq
        %v227 = vshrl.u32 %v226, 7
        %v228 = vsub.s32 0, %v227
        %v229 = vrot.slane %v219, %v228
        %v230 = vlaneseq
        %v231 = vshrl.u32 %v230, 7
        %v232 = vsub.s32 0, %v231
        %v233 = vrot.slane %v223, %v232
        %v234 = vmul.f32 %v208, %v229
        %v235 = vmul.f32 %v208, %v233
        %v236 = vmul.f32 %v213, %v229
        %v237 = vmul.f32 %v213, %v233
        %239 = vset.pattern.permute.xlu0 0
        %240 = vperm.xlu0 %239, %v203
        %v241 = vpop.permute.xlu0 %240
        %244 = vset.pattern.permute.xlu0 0
        %245 = vperm.xlu0 %244, %v204
        %v246 = vpop.permute.xlu0 %245
        %v248 = vadd.f32 %v234, %v241
        %v249 = vadd.f32 %v235, %v241
        %v250 = vadd.f32 %v236, %v246
        %v251 = vadd.f32 %v237, %v246
        %252 = vset.pattern.permute.xlu0 1
        %253 = vperm.xlu0 %252, %v201
        %v254 = vpop.permute.xlu0 %253
        %256 = vset.pattern.permute.xlu0 1
        %257 = vperm.xlu0 %256, %v202
        %v258 = vpop.permute.xlu0 %257
        %v260 = vlaneseq
        %v261 = vshrl.u32 %v260, 7
        %v262 = vsub.s32 1, %v261
        %v263 = vrot.slane %v200, %v262
        %v264 = vlaneseq
        %v265 = vshrl.u32 %v264, 7
        %v266 = vsub.s32 5, %v265
        %v267 = vrot.slane %v200, %v266
        %v270 = vlaneseq
        %v271 = vshrl.u32 %v270, 7
        %v272 = vsub.s32 1, %v271
        %v273 = vrot.slane %v263, %v272
        %v274 = vlaneseq
        %v275 = vshrl.u32 %v274, 7
        %v276 = vsub.s32 1, %v275
        %v277 = vrot.slane %v267, %v276
        %v278 = vmul.f32 %v254, %v273
        %v279 = vmul.f32 %v254, %v277
        %v280 = vmul.f32 %v258, %v273
        %v281 = vmul.f32 %v258, %v277
        %v282 = vadd.f32 %v248, %v278
        %v283 = vadd.f32 %v249, %v279
        %v284 = vadd.f32 %v250, %v280
        %v285 = vadd.f32 %v251, %v281
        %286 = vset.pattern.permute.xlu0 2
        %287 = vperm.xlu0 %286, %v201
        %v288 = vpop.permute.xlu0 %287
        %290 = vset.pattern.permute.xlu0 2
        %291 = vperm.xlu0 %290, %v202
        %v292 = vpop.permute.xlu0 %291
        %v294 = vlaneseq
        %v295 = vshrl.u32 %v294, 7
        %v296 = vsub.s32 2, %v295
        %v297 = vrot.slane %v200, %v296
        %v298 = vlaneseq
        %v299 = vshrl.u32 %v298, 7
        %v300 = vsub.s32 6, %v299
        %v301 = vrot.slane %v200, %v300
        %v304 = vlaneseq
        %v305 = vshrl.u32 %v304, 7
        %v306 = vsub.s32 2, %v305
        %v307 = vrot.slane %v297, %v306
        %v308 = vlaneseq
        %v309 = vshrl.u32 %v308, 7
        %v310 = vsub.s32 2, %v309
        %v311 = vrot.slane %v301, %v310
        %v312 = vmul.f32 %v288, %v307
        %v313 = vmul.f32 %v288, %v311
        %v314 = vmul.f32 %v292, %v307
        %v315 = vmul.f32 %v292, %v311
        %v316 = vadd.f32 %v282, %v312
        %v317 = vadd.f32 %v283, %v313
        %v318 = vadd.f32 %v284, %v314
        %v319 = vadd.f32 %v285, %v315
        %320 = vset.pattern.permute.xlu0 3
        %321 = vperm.xlu0 %320, %v201
        %v322 = vpop.permute.xlu0 %321
        %324 = vset.pattern.permute.xlu0 3
        %325 = vperm.xlu0 %324, %v202
        %v326 = vpop.permute.xlu0 %325
        %v328 = vlaneseq
        %v329 = vshrl.u32 %v328, 7
        %v330 = vsub.s32 3, %v329
        %v331 = vrot.slane %v200, %v330
        %v332 = vlaneseq
        %v333 = vshrl.u32 %v332, 7
        %v334 = vsub.s32 7, %v333
        %v335 = vrot.slane %v200, %v334
        %v338 = vlaneseq
        %v339 = vshrl.u32 %v338, 7
        %v340 = vsub.s32 3, %v339
        %v341 = vrot.slane %v331, %v340
        %v342 = vlaneseq
        %v343 = vshrl.u32 %v342, 7
        %v344 = vsub.s32 3, %v343
        %v345 = vrot.slane %v335, %v344
        %v346 = vmul.f32 %v322, %v341
        %v347 = vmul.f32 %v322, %v345
        %v348 = vmul.f32 %v326, %v341
        %v349 = vmul.f32 %v326, %v345
        %v350 = vadd.f32 %v316, %v346
        %v351 = vadd.f32 %v317, %v347
        %v352 = vadd.f32 %v318, %v348
        %v353 = vadd.f32 %v319, %v349
        %354 = vst [vmem:[%s188] sm:$0xff] %v350
        %355 = vst [vmem:[%s188 + $0x8] sm:$0xff] %v351
        %356 = vst [vmem:[%s188 + $0x10] sm:$0xff] %v352
        %357 = vst [vmem:[%s188 + $0x18] sm:$0xff] %v353
        %s358 = sand.u32 %s109, 1
        %s359 = scalar_lea.sflag [#allocation3], %s358
        %s360 = sand.u32 %s109, 1
        %s361 = smul.addr %s360, 32
        %s362 = scalar_lea.vmem [#allocation2], %s361
        // Predicated region
        $region33: #{tpu_custom_call.1} parent=31 // pred_check
          %p363 = pneg %p119
        $region34: #{tpu_custom_call.1} parent=31 // pred_check_branch
          %365 = sbr.rel (%p363) target = $region36
        $region35: #{tpu_custom_call.1} parent=31 // pred_region
          %s366 = smul.u32 2, %s22
          %s368 = ssub.s32 512, 512
          %369 = vsyncadd %s359, %s368
          %s370 = smul.addr %s21, 4
          %s371 = sadd.s32 %s366, %s370
          %s372 = smul.addr %s371, 128
          %s373 = scalar_lea.hbm %s3, %s372
          %s374 = sshll.u32 %s362, 4
          %s375 = int_to_ptr.vmem [resolvable:$true] %s374
          %380 = dma.vmem_to_hbm [thread:$0]  %s375, 512, %s373, %s359, 256, 256, 16
        $region36: #{tpu_custom_call.1} parent=31 // pred_fallthru
          _
      $region32: #{tpu_custom_call.1} parent=5 // pred_fallthru
        _
      %p381 = scmp.le.s32.totalorder 2, %s12
      // Predicated region
      $region37: #{tpu_custom_call.1} parent=5 // pred_check
        %p382 = pneg %p381
      $region38: #{tpu_custom_call.1} parent=5 // pred_check_branch
        %384 = sbr.rel (%p382) target = $region40
      $region39: #{tpu_custom_call.1} parent=5 // pred_region
        %s385 = ssub.s32 %s12, 2
        // Predicated region
        $region41: #{tpu_custom_call.1} parent=39 // pred_check
          %p386 = pneg %p125
        $region42: #{tpu_custom_call.1} parent=39 // pred_check_branch
          %388 = sbr.rel (%p386) target = $region44
        $region43: #{tpu_custom_call.1} parent=39 // pred_region
          %s389 = sand.u32 %s110, 1
          %s390 = scalar_lea.sflag [#allocation3], %s389
          %s391 = sand.u32 %s110, 1
          %s392 = smul.addr %s391, 32
          %s393 = scalar_lea.vmem [#allocation2], %s392
          %394 = dma.done %s390, 512
        $region44: #{tpu_custom_call.1} parent=39 // pred_fallthru
          _
      $region40: #{tpu_custom_call.1} parent=5 // pred_fallthru
        _
    $region6: #{tpu_custom_call.1} parent=1 // loop_footer
      %s16 = sadd.s32 1, %s12
    $region7: #{tpu_custom_call.1} parent=1 // loop_footer_branch
      %11 = sbr.rel target = $region3
    $region8: #{tpu_custom_call.1} parent=1 // loop_exit
      _
    %395 = vsyncpa [#allocation3], 1
    %s396 = scalar_lea.sflag [#allocation3], 1
    %397 = vsyncpa %s396, 1

</llo_original>
